<compile_context>
chip_gen: v7x
topology: tpu7x:2x2x1
jax: 0.10.0
libtpu: 0.0.40
codegen_flags: <defaults>
</compile_context>

<pallas_src>
import jax
import jax.numpy as jnp
from collections import OrderedDict
from jax.experimental import pallas as pl
from jax.experimental.pallas import tpu as pltpu


# ----------------------- Module framework (mirrors .py) --------------------

class Module(object):
    def forward(self, input):
        raise NotImplementedError

    def backward(self, gradwrtoutput):
        raise NotImplementedError

    def update_param(self, eta):
        return []

    # Hooks used by the fused Pallas executor (no-ops for param-free ops).
    def param_arrays(self):
        return ()

    def bind_params(self, vals):
        del vals


class Linear(Module):
    """y = x @ W + b with W:(F_in, F_out), b:(1, F_out)."""

    def __init__(self, w, b):
        self.w = w
        self.b = b
        self.output = None
        self._w_val = w
        self._b_val = b

    def param_arrays(self):
        return (self.w, self.b)

    def bind_params(self, vals):
        self._w_val, self._b_val = vals

    def forward(self, input_list):
        x = input_list[0]
        # MXU matmul in bf16 (v6e/v7x fast path), f32 accumulation.
        acc = jnp.dot(x.astype(jnp.bfloat16),
                      self._w_val.astype(jnp.bfloat16),
                      preferred_element_type=jnp.float32)
        # Bias add / epilogue stays f32 (v5e has no bf16 VPU).
        self.output = acc + self._b_val.astype(jnp.float32)
        return self.output


class ReLU(Module):
    def __init__(self):
        self.output = None

    def forward(self, input_list):
        self.output = jnp.maximum(input_list[0], 0.0)
        return self.output


class Add(Module):
    def __init__(self):
        self.output = None

    def forward(self, input_list):
        self.output = input_list[0] + input_list[1]
        return self.output


class Sequential(Module):
    """Faithful reproduction of the reference Sequential forward semantics."""

    def __init__(self, operators, connectivity, input_operators,
                 output_operator, loss, optim):
        self.operators = operators
        self.connectivity = connectivity
        self.input_operators = input_operators
        self.output_operator = output_operator
        self.optim = optim
        self.connectivity_backward = OrderedDict(
            reversed(list(self.connectivity.items())))
        self.connectivity_forward = {}
        for i in self.operators.keys():
            if i not in self.input_operators:
                tp_forward = ()
                for j in self.connectivity:
                    if i in self.connectivity[j]:
                        tp_forward = tp_forward + (j,)
                self.connectivity_forward[i] = tp_forward
        self.connectivity_forward = OrderedDict(self.connectivity_forward)
        self.loss = loss

    def forward(self, input):
        for i in self.input_operators:
            self.operators[i].forward([input])
        for opt_i, opt_o_list in self.connectivity_forward.items():
            input_list = []
            for opt_o in opt_o_list:
                input_list.append(self.operators[opt_o].output)
            self.operators[opt_i].forward(input_list)
        return self.operators[self.output_operator].output

    # TODO(synk): backward/update_param need the abstract loss/optim objects;
    # only the forward pass is implemented (fused into one Pallas kernel).
    def backward(self, gradwrtoutput):
        return []

    def update_param(self):
        return []


# ----------------------- Fused Pallas executor ------------------------------

def _collect_params(model):
    flat, counts = [], []
    for op in model.operators.values():
        pa = tuple(op.param_arrays())
        counts.append(len(pa))
        flat.extend(pa)
    return flat, counts


def _bind_params(model, counts, flat_vals):
    idx = 0
    for op, n in zip(model.operators.values(), counts):
        op.bind_params(tuple(flat_vals[idx:idx + n]))
        idx += n


def fused_sequential_forward(model, x, *, batch_tile=256):
    """Run model.forward as ONE fused Pallas TPU kernel.

    The Sequential DAG traversal (the reference code, unchanged) executes at
    trace time inside the kernel body, so the whole graph lowers to a single
    TPU kernel: one launch, all intermediates stay in VMEM.
    """
    B, F_in = x.shape
    params, counts = _collect_params(model)

    # Abstract trace (outside Pallas) just to get the output shape/dtype.
    def _shape_fn(xv, *pv):
        _bind_params(model, counts, pv)
        return model.forward(xv)

    out_struct = jax.eval_shape(_shape_fn, x, *params)
    F_out = out_struct.shape[-1]

    tb = min(batch_tile, B)
    assert B % tb == 0, "batch must be a multiple of the batch tile"
    grid = (pl.cdiv(B, tb),)

    def kernel(x_ref, *rest):
        param_refs, o_ref = rest[:-1], rest[-1]
        _bind_params(model, counts, tuple(r[...] for r in param_refs))
        out = model.forward(x_ref[...])          # reference traversal, fused
        o_ref[...] = out.astype(o_ref.dtype)

    # Weights/biases: full-array blocks, constant index_map -> stay resident
    # across batch-grid steps (no per-tile reload).
    param_specs = [
        pl.BlockSpec(p.shape, lambda i, nd=p.ndim: (0,) * nd) for p in params
    ]

    return pl.pallas_call(
        kernel,
        out_shape=jax.ShapeDtypeStruct((B, F_out), out_struct.dtype),
        grid=grid,
        in_specs=[pl.BlockSpec((tb, F_in), lambda i: (i, 0))] + param_specs,
        out_specs=pl.BlockSpec((tb, F_out), lambda i: (i, 0)),
        compiler_params=pltpu.CompilerParams(
            dimension_semantics=("parallel",)),
    )(x, *params)


# --------------------------------- main ------------------------------------

if __name__ == "__main__":
    # Lane-dense small shapes: hidden = 128 (multiple of 128 lanes),
    # batch = 16 (multiple of the bf16 sublane tile).
    B, H = 16, 128

    key = jax.random.PRNGKey(0)
    kx, kw1, kb1, kw2, kb2 = jax.random.split(key, 5)

    x = jax.random.normal(kx, (B, H), dtype=jnp.float32)
    w1 = jax.random.normal(kw1, (H, H), dtype=jnp.float32) * 0.1
    b1 = jax.random.normal(kb1, (1, H), dtype=jnp.float32) * 0.1
    w2 = jax.random.normal(kw2, (H, H), dtype=jnp.float32) * 0.1
    b2 = jax.random.normal(kb2, (1, H), dtype=jnp.float32) * 0.1

    operators = OrderedDict([
        ("fc1", Linear(w1, b1)),
        ("relu", ReLU()),
        ("fc2", Linear(w2, b2)),
        ("add", Add()),
    ])
    # producer -> consumers (matches the reference's connectivity convention)
    connectivity = OrderedDict([
        ("fc1", ("relu",)),
        ("relu", ("fc2", "add")),
        ("fc2", ("add",)),
    ])
    model = Sequential(operators, connectivity,
                       input_operators=["fc1"],
                       output_operator="add",
                       loss=None, optim=None)

    out = fused_sequential_forward(model, x)
    out = jax.block_until_ready(out)

    # Reference in plain JAX mirroring the kernel math (bf16 MXU, f32 accum).
    h1 = jnp.dot(x.astype(jnp.bfloat16), w1.astype(jnp.bfloat16),
                 preferred_element_type=jnp.float32) + b1
    r = jnp.maximum(h1, 0.0)
    h2 = jnp.dot(r.astype(jnp.bfloat16), w2.astype(jnp.bfloat16),
                 preferred_element_type=jnp.float32) + b2
    ref = r + h2

    assert out.shape == (B, H)
    assert out.dtype == jnp.float32
    assert jnp.allclose(out, ref, atol=1e-2, rtol=1e-2), \
        float(jnp.max(jnp.abs(out - ref)))

    print("KERNEL_OK")
</pallas_src>

<mosaic_0001>
module attributes {stable_mosaic.version = 11 : i64} {
  func.func @kernel(%arg0: i32, %arg1: memref<16x128xf32, #tpu.memory_space<vmem>>, %arg2: memref<128x128xf32, #tpu.memory_space<vmem>>, %arg3: memref<1x128xf32, #tpu.memory_space<vmem>>, %arg4: memref<128x128xf32, #tpu.memory_space<vmem>>, %arg5: memref<1x128xf32, #tpu.memory_space<vmem>>, %arg6: memref<16x128xf32, #tpu.memory_space<vmem>>) attributes {dimension_semantics = [#tpu.dimension_semantics<parallel>], iteration_bounds = array<i64: 1>, scalar_prefetch = 0 : i64, scratch_operands = 0 : i64, tpu.core_type = #tpu.core_type<tc>, window_params = [{transform_indices = @transform_0, window_bounds = array<i64: 16, 128>}, {pipeline_mode = #tpu.pipeline_mode<synchronous>, transform_indices = @transform_1, window_bounds = array<i64: 128, 128>}, {pipeline_mode = #tpu.pipeline_mode<synchronous>, transform_indices = @transform_2, window_bounds = array<i64: 1, 128>}, {pipeline_mode = #tpu.pipeline_mode<synchronous>, transform_indices = @transform_3, window_bounds = array<i64: 128, 128>}, {pipeline_mode = #tpu.pipeline_mode<synchronous>, transform_indices = @transform_4, window_bounds = array<i64: 1, 128>}, {transform_indices = @transform_5, window_bounds = array<i64: 16, 128>}]} {
    %c0 = arith.constant 0 : index
    %c0_0 = arith.constant 0 : index
    %0 = vector.load %arg2[%c0, %c0_0] : memref<128x128xf32, #tpu.memory_space<vmem>>, vector<128x128xf32>
    %c0_1 = arith.constant 0 : index
    %c0_2 = arith.constant 0 : index
    %1 = vector.load %arg3[%c0_1, %c0_2] : memref<1x128xf32, #tpu.memory_space<vmem>>, vector<1x128xf32>
    %c0_3 = arith.constant 0 : index
    %c0_4 = arith.constant 0 : index
    %2 = vector.load %arg4[%c0_3, %c0_4] : memref<128x128xf32, #tpu.memory_space<vmem>>, vector<128x128xf32>
    %c0_5 = arith.constant 0 : index
    %c0_6 = arith.constant 0 : index
    %3 = vector.load %arg5[%c0_5, %c0_6] : memref<1x128xf32, #tpu.memory_space<vmem>>, vector<1x128xf32>
    %c0_7 = arith.constant 0 : index
    %c0_8 = arith.constant 0 : index
    %4 = vector.load %arg1[%c0_7, %c0_8] : memref<16x128xf32, #tpu.memory_space<vmem>>, vector<16x128xf32>
    %5 = arith.truncf %4 : vector<16x128xf32> to vector<16x128xbf16>
    %6 = arith.truncf %0 : vector<128x128xf32> to vector<128x128xbf16>
    %cst = arith.constant dense<0.000000e+00> : vector<16x128xf32>
    %7 = tpu.matmul %5, %6, %cst {dimension_numbers = #tpu.dot_dimension_numbers<[1], [0], [0], [1], [0, 0, 1, 1], [], []>} : vector<16x128xbf16>, vector<128x128xbf16>, vector<16x128xf32> -> vector<16x128xf32>
    %8 = vector.broadcast %1 : vector<1x128xf32> to vector<16x128xf32>
    %9 = arith.addf %7, %8 : vector<16x128xf32>
    %cst_9 = arith.constant 0.000000e+00 : f32
    %10 = vector.broadcast %cst_9 : f32 to vector<16x128xf32>
    %11 = arith.maximumf %9, %10 : vector<16x128xf32>
    %12 = arith.truncf %11 : vector<16x128xf32> to vector<16x128xbf16>
    %13 = arith.truncf %2 : vector<128x128xf32> to vector<128x128xbf16>
    %cst_10 = arith.constant dense<0.000000e+00> : vector<16x128xf32>
    %14 = tpu.matmul %12, %13, %cst_10 {dimension_numbers = #tpu.dot_dimension_numbers<[1], [0], [0], [1], [0, 0, 1, 1], [], []>} : vector<16x128xbf16>, vector<128x128xbf16>, vector<16x128xf32> -> vector<16x128xf32>
    %15 = vector.broadcast %3 : vector<1x128xf32> to vector<16x128xf32>
    %16 = arith.addf %14, %15 : vector<16x128xf32>
    %17 = arith.addf %11, %16 : vector<16x128xf32>
    %c0_11 = arith.constant 0 : index
    %c0_12 = arith.constant 0 : index
    %18 = vector.load %arg6[%c0_11, %c0_12] : memref<16x128xf32, #tpu.memory_space<vmem>>, vector<16x128xf32>
    tpu.vector_store %arg6[%c0_11, %c0_12], %17 {strides = array<i32>} : memref<16x128xf32, #tpu.memory_space<vmem>>, vector<16x128xf32>,
    return
  }
  func.func @transform_0(%arg0: i32) -> (i32, i32) {
    %c0_i32 = arith.constant 0 : i32
    %c0_i32_0 = arith.constant 0 : i32
    return %arg0, %c0_i32 : i32, i32
  }
  func.func @transform_1(%arg0: i32) -> (i32, i32) {
    %c0_i32 = arith.constant 0 : i32
    %c0_i32_0 = arith.constant 0 : i32
    %c0_i32_1 = arith.constant 0 : i32
    return %c0_i32, %c0_i32_0 : i32, i32
  }
  func.func @transform_2(%arg0: i32) -> (i32, i32) {
    %c0_i32 = arith.constant 0 : i32
    %c0_i32_0 = arith.constant 0 : i32
    %c0_i32_1 = arith.constant 0 : i32
    return %c0_i32, %c0_i32_0 : i32, i32
  }
  func.func @transform_3(%arg0: i32) -> (i32, i32) {
    %c0_i32 = arith.constant 0 : i32
    %c0_i32_0 = arith.constant 0 : i32
    %c0_i32_1 = arith.constant 0 : i32
    return %c0_i32, %c0_i32_0 : i32, i32
  }
  func.func @transform_4(%arg0: i32) -> (i32, i32) {
    %c0_i32 = arith.constant 0 : i32
    %c0_i32_0 = arith.constant 0 : i32
    %c0_i32_1 = arith.constant 0 : i32
    return %c0_i32, %c0_i32_0 : i32, i32
  }
  func.func @transform_5(%arg0: i32) -> (i32, i32) {
    %c0_i32 = arith.constant 0 : i32
    %c0_i32_0 = arith.constant 0 : i32
    return %arg0, %c0_i32 : i32, i32
  }
}

</mosaic_0001>

<llo_original>
// kernel: tpu_custom_call.1
$region0: #{tpu_custom_call.1}
  #allocation0 [shape = 'u32[]', space=smem, size = 0x4, offset = 0x4, fixed_abs, tag = 'smem constant byte address 0x4 - core index']
  #allocation1 [shape = 'u32[144,128]{1,0:T(1,128)}', space=vmem, size = 0x12000, scoped, tag = 'internal scratch']
  %s0 = inlined_call_operand.hbm [shape: f32[16,128], index: 0, kind: input, shape index: {}]
  %s1 = inlined_call_operand.hbm [shape: f32[128,128], index: 1, kind: input, shape index: {}]
  %s2 = inlined_call_operand.vmem [shape: f32[1,128], index: 2, kind: input, shape index: {}]
  %s3 = inlined_call_operand.hbm [shape: f32[128,128], index: 3, kind: input, shape index: {}]
  %s4 = inlined_call_operand.vmem [shape: f32[1,128], index: 4, kind: input, shape index: {}]
  %s5 = inlined_call_operand.hbm [shape: f32[16,128], index: 5, kind: output, shape index: {}]
  %s6 = sld [smem:[#allocation0]]
  $region42: #{tpu_custom_call.1} parent=0
    _
  %s8 = ssub.s32 1, %s6
  %s9 = scalar_select 0, %s8, %s6
  $region1: #{tpu_custom_call.1} parent=0
    #allocation2 [shape = 'u8[8192]{0}', space=vmem, size = 0x2000, scoped, tag = 'input window, operand 0, single buffered']
    #allocation3 [shape = 's32[1]{0}', space=sflag, size = 0x4, scoped, tag = 'scoped memory for tpu_custom_call.1']
    #allocation4 [shape = 's32[1]{0}', space=sflag, size = 0x4, scoped, tag = 'scoped memory for tpu_custom_call.1']
    #allocation5 [shape = 'u8[65536]{0}', space=vmem, size = 0x10000, scoped, tag = 'input window, operand 1, single buffered']
    #allocation6 [shape = 's32[1]{0}', space=sflag, size = 0x4, scoped, tag = 'scoped memory for tpu_custom_call.1']
    #allocation7 [shape = 'u8[65536]{0}', space=vmem, size = 0x10000, scoped, tag = 'input window, operand 3, single buffered']
    #allocation8 [shape = 'u8[8192]{0}', space=vmem, size = 0x2000, scoped, tag = 'output window, operand 0, single buffered']
    %10 = vsyncpa [#allocation3], 0
    %11 = vsyncpa [#allocation6], 0
    %12 = vsyncpa [#allocation4], 0
    // Predicated region
    $region2: #{tpu_custom_call.1} parent=1 // pred_check
      _
    $region3: #{tpu_custom_call.1} parent=1 // pred_check_branch
      %14 = sbr.rel (0) target = $region5
    $region4: #{tpu_custom_call.1} parent=1 // pred_region
      %s16 = ssub.s32 256, 256
      %17 = vsyncadd [#allocation3], %s16
      %s18 = sshll.u32 [#allocation2], 4
      %s19 = int_to_ptr.vmem [resolvable:$true] %s18
      %24 = dma.hbm_to_vmem [thread:$0]  %s0, 256, %s19, [#allocation3], 128, 128, 8
    $region5: #{tpu_custom_call.1} parent=1 // pred_fallthru
      _
    // Predicated region
    $region6: #{tpu_custom_call.1} parent=1 // pred_check
      _
    $region7: #{tpu_custom_call.1} parent=1 // pred_check_branch
      %26 = sbr.rel (0) target = $region9
    $region8: #{tpu_custom_call.1} parent=1 // pred_region
      %s28 = ssub.s32 2048, 2048
      %29 = vsyncadd [#allocation6], %s28
      %s30 = sshll.u32 [#allocation5], 4
      %s31 = int_to_ptr.vmem [resolvable:$true] %s30
      %36 = dma.hbm_to_vmem [thread:$0]  %s1, 2048, %s31, [#allocation6], 128, 128, 8
    $region9: #{tpu_custom_call.1} parent=1 // pred_fallthru
      _
    // Predicated region
    $region10: #{tpu_custom_call.1} parent=1 // pred_check
      _
    $region11: #{tpu_custom_call.1} parent=1 // pred_check_branch
      %38 = sbr.rel (0) target = $region13
    $region12: #{tpu_custom_call.1} parent=1 // pred_region
      _
    $region13: #{tpu_custom_call.1} parent=1 // pred_fallthru
      _
    // Predicated region
    $region14: #{tpu_custom_call.1} parent=1 // pred_check
      _
    $region15: #{tpu_custom_call.1} parent=1 // pred_check_branch
      %40 = sbr.rel (0) target = $region17
    $region16: #{tpu_custom_call.1} parent=1 // pred_region
      %s42 = ssub.s32 2048, 2048
      %43 = vsyncadd [#allocation6], %s42
      %s44 = sshll.u32 [#allocation7], 4
      %s45 = int_to_ptr.vmem [resolvable:$true] %s44
      %50 = dma.hbm_to_vmem [thread:$0]  %s3, 2048, %s45, [#allocation6], 128, 128, 8
    $region17: #{tpu_custom_call.1} parent=1 // pred_fallthru
      _
    // Predicated region
    $region18: #{tpu_custom_call.1} parent=1 // pred_check
      _
    $region19: #{tpu_custom_call.1} parent=1 // pred_check_branch
      %52 = sbr.rel (0) target = $region21
    $region20: #{tpu_custom_call.1} parent=1 // pred_region
      _
    $region21: #{tpu_custom_call.1} parent=1 // pred_fallthru
      _
    // Predicated region
    $region22: #{tpu_custom_call.1} parent=1 // pred_check
      _
    $region23: #{tpu_custom_call.1} parent=1 // pred_check_branch
      %54 = sbr.rel (0) target = $region25
    $region24: #{tpu_custom_call.1} parent=1 // pred_region
      %55 = dma.done [#allocation3], 256
    $region25: #{tpu_custom_call.1} parent=1 // pred_fallthru
      _
    // Predicated region
    $region26: #{tpu_custom_call.1} parent=1 // pred_check
      _
    $region27: #{tpu_custom_call.1} parent=1 // pred_check_branch
      %57 = sbr.rel (0) target = $region29
    $region28: #{tpu_custom_call.1} parent=1 // pred_region
      %58 = dma.done [#allocation6], 2048
    $region29: #{tpu_custom_call.1} parent=1 // pred_fallthru
      _
    // Predicated region
    $region30: #{tpu_custom_call.1} parent=1 // pred_check
      _
    $region31: #{tpu_custom_call.1} parent=1 // pred_check_branch
      %60 = sbr.rel (0) target = $region33
    $region32: #{tpu_custom_call.1} parent=1 // pred_region
      %61 = dma.done [#allocation6], 2048
    $region33: #{tpu_custom_call.1} parent=1 // pred_fallthru
      _
    %v63 = vld [vmem:[#allocation5] sm:$0xff]
    %v64 = vld [vmem:[#allocation5 + $0x8] sm:$0xff]
    %v65 = vld [vmem:[#allocation5 + $0x10] sm:$0xff]
    %v66 = vld [vmem:[#allocation5 + $0x18] sm:$0xff]
    %v67 = vld [vmem:[#allocation5 + $0x20] sm:$0xff]
    %v68 = vld [vmem:[#allocation5 + $0x28] sm:$0xff]
    %v69 = vld [vmem:[#allocation5 + $0x30] sm:$0xff]
    %v70 = vld [vmem:[#allocation5 + $0x38] sm:$0xff]
    %v71 = vld [vmem:[#allocation5 + $0x40] sm:$0xff]
    %v72 = vld [vmem:[#allocation5 + $0x48] sm:$0xff]
    %v73 = vld [vmem:[#allocation5 + $0x50] sm:$0xff]
    %v74 = vld [vmem:[#allocation5 + $0x58] sm:$0xff]
    %v75 = vld [vmem:[#allocation5 + $0x60] sm:$0xff]
    %v76 = vld [vmem:[#allocation5 + $0x68] sm:$0xff]
    %v77 = vld [vmem:[#allocation5 + $0x70] sm:$0xff]
    %v78 = vld [vmem:[#allocation5 + $0x78] sm:$0xff]
    %v79 = vld [vmem:[%s2] sm:$0x1]
    %v80 = vld [vmem:[#allocation7] sm:$0xff]
    %v81 = vld [vmem:[#allocation7 + $0x8] sm:$0xff]
    %v82 = vld [vmem:[#allocation7 + $0x10] sm:$0xff]
    %v83 = vld [vmem:[#allocation7 + $0x18] sm:$0xff]
    %v84 = vld [vmem:[#allocation7 + $0x20] sm:$0xff]
    %v85 = vld [vmem:[#allocation7 + $0x28] sm:$0xff]
    %v86 = vld [vmem:[#allocation7 + $0x30] sm:$0xff]
    %v87 = vld [vmem:[#allocation7 + $0x38] sm:$0xff]
    %v88 = vld [vmem:[#allocation7 + $0x40] sm:$0xff]
    %v89 = vld [vmem:[#allocation7 + $0x48] sm:$0xff]
    %v90 = vld [vmem:[#allocation7 + $0x50] sm:$0xff]
    %v91 = vld [vmem:[#allocation7 + $0x58] sm:$0xff]
    %v92 = vld [vmem:[#allocation7 + $0x60] sm:$0xff]
    %v93 = vld [vmem:[#allocation7 + $0x68] sm:$0xff]
    %v94 = vld [vmem:[#allocation7 + $0x70] sm:$0xff]
    %v95 = vld [vmem:[#allocation7 + $0x78] sm:$0xff]
    %v96 = vld [vmem:[%s4] sm:$0x1]
    %v97 = vld [vmem:[#allocation2] sm:$0xff]
    %v98 = vld [vmem:[#allocation2 + $0x8] sm:$0xff]
    %v99 = vpack.c.bf16 %v98, %v97
    %v100 = vpack.c.bf16 %v64, %v63
    %v101 = vpack.c.bf16 %v66, %v65
    %v102 = vpack.c.bf16 %v68, %v67
    %v103 = vpack.c.bf16 %v70, %v69
    %v104 = vpack.c.bf16 %v72, %v71
    %v105 = vpack.c.bf16 %v74, %v73
    %v106 = vpack.c.bf16 %v76, %v75
    %v107 = vpack.c.bf16 %v78, %v77
    %v109 = vlaneseq
    %v110 = vshrl.u32 %v109, 7
    %v111 = vsub.s32 0, %v110
    %v112 = vrot.slane %v79, %v111
    %114 = vmatprep.subr.bf16.mxu0 0
    %115 = vmatpush1.bf16.msra.mxu0 %v100
    %116 = vmatprep.subr.bf16.mxu0 0
    %117 = vmatpush1.bf16.msra.mxu0 %v101
    %118 = vmatprep.subr.bf16.mxu0 0
    %119 = vmatpush1.bf16.msra.mxu0 %v102
    %120 = vmatprep.subr.bf16.mxu0 0
    %121 = vmatpush1.bf16.msra.mxu0 %v103
    %122 = vmatprep.subr.bf16.mxu0 0
    %123 = vmatpush1.bf16.msra.mxu0 %v104
    %124 = vmatprep.subr.bf16.mxu0 0
    %125 = vmatpush1.bf16.msra.mxu0 %v105
    %126 = vmatprep.subr.bf16.mxu0 0
    %127 = vmatpush1.bf16.msra.mxu0 %v106
    %128 = vmatprep.subr.bf16.mxu0 0
    %129 = vmatpush1.bf16.msra.mxu0 %v107
    %130 = vmatprep.subr.bf16.mxu0 0
    %131 = vmatpush1.bf16.msra.mxu0 0
    %132 = vmatprep.subr.bf16.mxu0 0
    %133 = vmatpush1.bf16.msra.mxu0 0
    %134 = vmatprep.subr.bf16.mxu0 0
    %135 = vmatpush1.bf16.msra.mxu0 0
    %136 = vmatprep.subr.bf16.mxu0 0
    %137 = vmatpush1.bf16.msra.mxu0 0
    %138 = vmatprep.subr.bf16.mxu0 0
    %139 = vmatpush1.bf16.msra.mxu0 0
    %140 = vmatprep.subr.bf16.mxu0 0
    %141 = vmatpush1.bf16.msra.mxu0 0
    %142 = vmatprep.subr.bf16.mxu0 0
    %143 = vmatpush1.bf16.msra.mxu0 0
    %144 = vmatprep.subr.bf16.mxu0 0
    %145 = vmatpush1.bf16.msra.mxu0 0
    %146 = vmatprep.mubr.bf16.mxu0 0
    %147 = vmatmul.mubr.bf16.gmra.mrb[0].mxu0 %v99
    %v148 = vpop.f32.mrb[0].mxu0
    %v149 = vadd.f32 %v112, %v148
    %v150 = vpop.f32.mrb[0].mxu0
    %v151 = vpop.f32.mrb[0].mxu0
    %v152 = vadd.f32 %v112, %v151
    %v153 = vpop.f32.mrb[0].mxu0
    %154 = vdwg.mxu0
    %v155 = vmax.f32 %v149, 0.0
    %v156 = vmax.f32 %v152, 0.0
    %v157 = vpack.c.bf16 %v156, %v155
    %v158 = vpack.c.bf16 %v81, %v80
    %v159 = vpack.c.bf16 %v83, %v82
    %v160 = vpack.c.bf16 %v85, %v84
    %v161 = vpack.c.bf16 %v87, %v86
    %v162 = vpack.c.bf16 %v89, %v88
    %v163 = vpack.c.bf16 %v91, %v90
    %v164 = vpack.c.bf16 %v93, %v92
    %v165 = vpack.c.bf16 %v95, %v94
    %v167 = vlaneseq
    %v168 = vshrl.u32 %v167, 7
    %v169 = vsub.s32 0, %v168
    %v170 = vrot.slane %v96, %v169
    %172 = vmatprep.subr.bf16.mxu0 0
    %173 = vmatpush1.bf16.msra.mxu0 %v158
    %174 = vmatprep.subr.bf16.mxu0 0
    %175 = vmatpush1.bf16.msra.mxu0 %v159
    %176 = vmatprep.subr.bf16.mxu0 0
    %177 = vmatpush1.bf16.msra.mxu0 %v160
    %178 = vmatprep.subr.bf16.mxu0 0
    %179 = vmatpush1.bf16.msra.mxu0 %v161
    %180 = vmatprep.subr.bf16.mxu0 0
    %181 = vmatpush1.bf16.msra.mxu0 %v162
    %182 = vmatprep.subr.bf16.mxu0 0
    %183 = vmatpush1.bf16.msra.mxu0 %v163
    %184 = vmatprep.subr.bf16.mxu0 0
    %185 = vmatpush1.bf16.msra.mxu0 %v164
    %186 = vmatprep.subr.bf16.mxu0 0
    %187 = vmatpush1.bf16.msra.mxu0 %v165
    %188 = vmatprep.subr.bf16.mxu0 0
    %189 = vmatpush1.bf16.msra.mxu0 0
    %190 = vmatprep.subr.bf16.mxu0 0
    %191 = vmatpush1.bf16.msra.mxu0 0
    %192 = vmatprep.subr.bf16.mxu0 0
    %193 = vmatpush1.bf16.msra.mxu0 0
    %194 = vmatprep.subr.bf16.mxu0 0
    %195 = vmatpush1.bf16.msra.mxu0 0
    %196 = vmatprep.subr.bf16.mxu0 0
    %197 = vmatpush1.bf16.msra.mxu0 0
    %198 = vmatprep.subr.bf16.mxu0 0
    %199 = vmatpush1.bf16.msra.mxu0 0
    %200 = vmatprep.subr.bf16.mxu0 0
    %201 = vmatpush1.bf16.msra.mxu0 0
    %202 = vmatprep.subr.bf16.mxu0 0
    %203 = vmatpush1.bf16.msra.mxu0 0
    %204 = vmatprep.mubr.bf16.mxu0 0
    %205 = vmatmul.mubr.bf16.gmra.mrb[0].mxu0 %v157
    %v206 = vpop.f32.mrb[0].mxu0
    %v207 = vadd.f32 %v170, %v206
    %v208 = vpop.f32.mrb[0].mxu0
    %v209 = vpop.f32.mrb[0].mxu0
    %v210 = vadd.f32 %v170, %v209
    %v211 = vpop.f32.mrb[0].mxu0
    %212 = vdwg.mxu0
    %v213 = vadd.f32 %v155, %v207
    %v214 = vadd.f32 %v156, %v210
    %215 = vst [vmem:[#allocation8] sm:$0xff] %v213
    %216 = vst [vmem:[#allocation8 + $0x8] sm:$0xff] %v214
    // Predicated region
    $region34: #{tpu_custom_call.1} parent=1 // pred_check
      _
    $region35: #{tpu_custom_call.1} parent=1 // pred_check_branch
      %218 = sbr.rel (0) target = $region37
    $region36: #{tpu_custom_call.1} parent=1 // pred_region
      %s220 = ssub.s32 256, 256
      %221 = vsyncadd [#allocation4], %s220
      %s222 = sshll.u32 [#allocation8], 4
      %s223 = int_to_ptr.vmem [resolvable:$true] %s222
      %228 = dma.vmem_to_hbm [thread:$0]  %s223, 256, %s5, [#allocation4], 128, 128, 8
    $region37: #{tpu_custom_call.1} parent=1 // pred_fallthru
      _
    // Predicated region
    $region38: #{tpu_custom_call.1} parent=1 // pred_check
      _
    $region39: #{tpu_custom_call.1} parent=1 // pred_check_branch
      %230 = sbr.rel (0) target = $region41
    $region40: #{tpu_custom_call.1} parent=1 // pred_region
      %231 = dma.done [#allocation4], 256
    $region41: #{tpu_custom_call.1} parent=1 // pred_fallthru
      _
    %232 = vsyncpa [#allocation3], 1
    %233 = vsyncpa [#allocation6], 1
    %234 = vsyncpa [#allocation4], 1

</llo_original>
